<compile_context>
chip_gen: v7x
topology: tpu7x:2x2x1
jax: 0.10.0
libtpu: 0.0.40
codegen_flags: <defaults>
</compile_context>

<pallas_src>
import math
import numpy as np
import jax
import jax.numpy as jnp
from jax.experimental import pallas as pl
from jax.experimental.pallas import tpu as pltpu

B, L, D = 2, 16, 32       # batch, max_len, proj_dim (d_hidden)
T = 8                     # num_targets per example
C = 4                     # n_classes
H = 64                    # classifier hidden dim (jiant 'mlp' Classifier d_hid)
N_SPANS = 2
OUT_LANES = 128           # lane-dense output slab width


def _make_kernel(b, l, t, c, d, h, out_lanes):
    bl = b * l
    bt = b * t

    def kernel(x_ref, idx_ref, p_ref, out_ref):
        x = x_ref[...]                                     # [BL, D] f32 (batch flattened)
        idx = idx_ref[...]                                 # [BT, 8] i32

        # ---- packed parameter slab -------------------------------------------------
        w1 = p_ref[0:2 * d, :]                             # [2D, H]   classifier Linear1
        wa = p_ref[2 * d:3 * d, :]                         # [D, H]    lanes 0,1 = attn heads
        b1 = p_ref[3 * d + 0:3 * d + 1, :]                 # [1, H]
        ln_g = p_ref[3 * d + 1:3 * d + 2, :]               # [1, H]
        ln_b = p_ref[3 * d + 2:3 * d + 3, :]               # [1, H]
        b2 = p_ref[3 * d + 3:3 * d + 4, :]                 # [1, H]    lanes >= C are zero
        w2 = p_ref[3 * d + 8:3 * d + 8 + h, :]             # [H, H]    lanes >= C are zero

        # ---- both SelfAttentiveSpanExtractors, fused --------------------------------
        # attention Linear bias cancels exactly in the softmax ratio -> omitted.
        att = jnp.dot(x, wa, preferred_element_type=jnp.float32)      # [BL, H]; lanes 0,1 live
        att1 = att[:, 0:1]
        att2 = att[:, 1:2]
        # per-head global max is enough for stability at these scales and cancels in num/den
        g1 = jnp.exp(att1 - jnp.max(att1, axis=0, keepdims=True))     # [BL, 1]
        g2 = jnp.exp(att2 - jnp.max(att2, axis=0, keepdims=True))     # [BL, 1]
        rhs = jnp.concatenate([x * g1, x * g2, g1, g2], axis=-1)      # [BL, 2D+2]

        starts = jnp.concatenate([idx[:, 0:1], idx[:, 2:3]], axis=0)  # [2BT, 1]
        ends = jnp.concatenate([idx[:, 1:2], idx[:, 3:4]], axis=0)    # [2BT, 1]
        offs = jnp.concatenate([idx[:, 5:6], idx[:, 5:6]], axis=0)    # [2BT, 1] batch offsets
        live = starts >= 0                                            # padded spans -> False
        pos = jax.lax.broadcasted_iota(jnp.int32, (2 * bt, bl), 1)
        valid = ((pos >= starts + offs) & (pos <= ends + offs) & live).astype(jnp.float32)

        # one MXU push gives numerators and denominators for both extractors
        nd = jnp.dot(valid, rhs, preferred_element_type=jnp.float32)  # [2BT, 2D+2]
        se1 = nd[0:bt, 0:d] / (nd[0:bt, 2 * d:2 * d + 1] + 1e-13)     # [BT, D]
        se2 = nd[bt:2 * bt, d:2 * d] / (nd[bt:2 * bt, 2 * d + 1:2 * d + 2] + 1e-13)
        se = jnp.concatenate([se1, se2], axis=-1)                     # [BT, 2D]

        # ---- Classifier: Linear -> Tanh -> LayerNorm -> Linear (dropout = identity) --
        hid = jnp.tanh(jnp.dot(se, w1, preferred_element_type=jnp.float32) + b1)   # [BT, H]
        mu = jnp.mean(hid, axis=-1, keepdims=True)
        var = jnp.mean((hid - mu) ** 2, axis=-1, keepdims=True)
        hn = (hid - mu) * jax.lax.rsqrt(var + 1e-5) * ln_g + ln_b
        logits_pad = jnp.dot(hn, w2, preferred_element_type=jnp.float32) + b2      # [BT, H]
        logits = logits_pad[:, 0:c]                                                # [BT, C]
        probs = 1.0 / (1.0 + jnp.exp(-logits))                                     # sigmoid preds

        # ---- masked BCE, fully reduced in-kernel -------------------------------------
        labels = idx[:, 4:5]                                           # [BT, 1]
        cls_ids = jax.lax.broadcasted_iota(jnp.int32, (bt, c), 1)
        y = (cls_ids == labels).astype(jnp.float32)                    # one-hot; pad (-1) -> 0
        row_mask = (idx[:, 0:1] != -1).astype(jnp.float32)             # span_mask
        pclip = jnp.clip(probs, 1e-7, 1.0 - 1e-7)
        bce = -(y * jnp.log(pclip) + (1.0 - y) * jnp.log(1.0 - pclip)) * row_mask
        loss_sum = jnp.sum(jnp.sum(bce, axis=1, keepdims=True), axis=0, keepdims=True)  # [1,1]

        # ---- one lane-dense output slab: [logits | probs | loss | zeros] --------------
        out_ref[...] = jnp.concatenate(
            [logits, probs,
             jnp.broadcast_to(loss_sum, (bt, 1)),
             jnp.zeros((bt, out_lanes - 2 * c - 1), jnp.float32)],
            axis=-1)

    return kernel


def edge_classifier_pallas(batch1, span1s, span2s, labels, params):
    (wa1, _ba1, wa2, _ba2, w1, b1, ln_g, ln_b, w2, b2) = params   # attn biases cancel -> unused
    b_, l_, d_ = batch1.shape
    t_ = span1s.shape[1]
    h_ = w1.shape[1]
    c_ = w2.shape[1]

    # ---- pack inputs into three lane-dense slabs (layout plumbing only) ----
    x_flat = batch1.reshape(b_ * l_, d_)

    boff = jnp.repeat(jnp.arange(b_, dtype=jnp.int32) * l_, t_).reshape(b_ * t_, 1)
    idx = jnp.concatenate(
        [span1s.reshape(b_ * t_, 2).astype(jnp.int32),
         span2s.reshape(b_ * t_, 2).astype(jnp.int32),
         labels.reshape(b_ * t_, 1).astype(jnp.int32),
         boff,
         jnp.zeros((b_ * t_, 2), jnp.int32)], axis=-1)                # [BT, 8]

    wa_rows = jnp.pad(jnp.concatenate([wa1, wa2], axis=1), ((0, 0), (0, h_ - 2)))   # [D, H]
    vec_rows = jnp.concatenate(
        [b1, ln_g, ln_b, jnp.pad(b2, ((0, 0), (0, h_ - c_))),
         jnp.zeros((4, h_), jnp.float32)], axis=0)                                   # [8, H]
    w2_rows = jnp.pad(w2, ((0, 0), (0, h_ - c_)))                                    # [H, H]
    pslab = jnp.concatenate([w1, wa_rows, vec_rows, w2_rows], axis=0)                # [3D+8+H, H]

    kernel = _make_kernel(b_, l_, t_, c_, d_, h_, OUT_LANES)
    out = pl.pallas_call(
        kernel,
        out_shape=jax.ShapeDtypeStruct((b_ * t_, OUT_LANES), jnp.float32),
        in_specs=[pl.BlockSpec(memory_space=pltpu.MemorySpace.VMEM)] * 3,
        out_specs=pl.BlockSpec(memory_space=pltpu.MemorySpace.VMEM),
    )(x_flat, idx, pslab)

    logits = out[:, 0:c_].reshape(b_, t_, c_)
    probs = out[:, c_:2 * c_].reshape(b_, t_, c_)
    loss_sum = out[0, 2 * c_]
    return logits, probs, loss_sum


def reference_logits(x, sp1, sp2, params):
    """Pure-JAX reference (AllenNLP-style masked softmax) for correctness check."""
    wa1, ba1, wa2, ba2, w1, b1, ln_g, ln_b, w2, b2 = params
    _, l_, _ = x.shape

    def extract(spans, wa, ba):
        att = (x @ wa)[..., 0] + ba[0, 0]                      # [B, L]
        starts = spans[..., 0][..., None]
        ends = spans[..., 1][..., None]
        posr = jnp.arange(l_)[None, None, :]
        valid = (posr >= starts) & (posr <= ends) & (starts >= 0)
        s = jnp.where(valid, att[:, None, :], -1e30)
        m = jnp.max(s, axis=-1, keepdims=True)
        e = jnp.exp(s - m) * valid
        w = e / (jnp.sum(e, axis=-1, keepdims=True) + 1e-13)
        return jnp.einsum('btl,bld->btd', w, x)

    se = jnp.concatenate([extract(sp1, wa1, ba1), extract(sp2, wa2, ba2)], axis=-1)
    h = jnp.tanh(se @ w1 + b1[0])
    mu = jnp.mean(h, -1, keepdims=True)
    var = jnp.mean((h - mu) ** 2, -1, keepdims=True)
    hn = (h - mu) * jax.lax.rsqrt(var + 1e-5) * ln_g[0] + ln_b[0]
    return hn @ w2 + b2[0]


if __name__ == "__main__":
    key = jax.random.PRNGKey(0)
    ks = jax.random.split(key, 12)

    batch1 = jax.random.normal(ks[0], (B, L, D), dtype=jnp.float32)

    # spans: inclusive [start, end]; last 2 targets of each example are padding (-1)
    a1 = jax.random.randint(ks[1], (B, T), 0, L)
    e1 = jax.random.randint(ks[2], (B, T), 0, L)
    sp1 = jnp.stack([jnp.minimum(a1, e1), jnp.maximum(a1, e1)], axis=-1)
    a2 = jax.random.randint(ks[3], (B, T), 0, L)
    e2 = jax.random.randint(ks[4], (B, T), 0, L)
    sp2 = jnp.stack([jnp.minimum(a2, e2), jnp.maximum(a2, e2)], axis=-1)
    pad = jnp.arange(T)[None, :] >= (T - 2)
    sp1 = jnp.where(pad[..., None], -1, sp1).astype(jnp.int32)
    sp2 = jnp.where(pad[..., None], -1, sp2).astype(jnp.int32)
    labels = jnp.where(pad, -1, jax.random.randint(ks[5], (B, T), 0, C)).astype(jnp.int32)

    def init(k, shape, fan_in):
        return jax.random.normal(k, shape, dtype=jnp.float32) / math.sqrt(fan_in)

    params = (
        init(ks[6], (D, 1), D),             # span-extractor-1 global attention weight
        jnp.zeros((1, 1), jnp.float32),     # span-extractor-1 attention bias (cancels)
        init(ks[7], (D, 1), D),             # span-extractor-2 global attention weight
        jnp.zeros((1, 1), jnp.float32),     # span-extractor-2 attention bias (cancels)
        init(ks[8], (2 * D, H), 2 * D),     # classifier Linear1 weight ([in, out])
        init(ks[9], (1, H), 2 * D),         # classifier Linear1 bias
        jnp.ones((1, H), jnp.float32),      # LayerNorm gamma
        jnp.zeros((1, H), jnp.float32),     # LayerNorm beta
        init(ks[10], (H, C), H),            # classifier Linear2 weight
        init(ks[11], (1, C), H),            # classifier Linear2 bias
    )

    logits_all, probs_all, loss_sum = edge_classifier_pallas(batch1, sp1, sp2, labels, params)
    jax.block_until_ready((logits_all, probs_all, loss_sum))

    # -------- host-side glue (data-dependent row selection, exactly like forward()) --------
    span_mask = np.asarray(sp1[:, :, 0] != -1)                         # out['mask']
    n_targets = int(span_mask.sum())                                   # out['n_targets'] / 'n_exs'
    flat_mask = span_mask.reshape(-1)
    logits_sel = np.asarray(logits_all).reshape(B * T, C)[flat_mask]   # out['logits']
    preds_sel = np.asarray(probs_all).reshape(B * T, C)[flat_mask]     # out['preds']
    lab_sel = np.asarray(labels).reshape(-1)[flat_mask]
    binary_labels = np.eye(C, dtype=np.float32)[lab_sel]               # out['labels'] (one-hot)
    loss = float(np.asarray(loss_sum) / (n_targets * C))               # out['loss'] (BCE mean)

    out = {"mask": span_mask, "n_targets": n_targets, "n_exs": n_targets,
           "logits": logits_sel, "labels": binary_labels, "loss": loss, "preds": preds_sel}

    # -------- correctness check against pure-JAX reference --------
    ref = np.asarray(reference_logits(batch1, sp1, sp2, params)).reshape(B * T, C)[flat_mask]
    ref_p = np.clip(1.0 / (1.0 + np.exp(-ref)), 1e-7, 1.0 - 1e-7)
    ref_loss = float(np.mean(-(binary_labels * np.log(ref_p)
                               + (1.0 - binary_labels) * np.log(1.0 - ref_p))))
    np.testing.assert_allclose(logits_sel, ref, rtol=2e-2, atol=2e-2)
    np.testing.assert_allclose(loss, ref_loss, rtol=2e-2, atol=2e-2)

    print("KERNEL_OK")
</pallas_src>

<mosaic_0001>
module attributes {stable_mosaic.version = 11 : i64} {
  func.func @kernel(%arg0: memref<32x32xf32, #tpu.memory_space<vmem>>, %arg1: memref<16x8xi32, #tpu.memory_space<vmem>>, %arg2: memref<168x64xf32, #tpu.memory_space<vmem>>, %arg3: memref<16x128xf32, #tpu.memory_space<vmem>>) attributes {dimension_semantics = [], scalar_prefetch = 0 : i64, scratch_operands = 0 : i64, tpu.core_type = #tpu.core_type<tc>} {
    %c0 = arith.constant 0 : index
    %c0_0 = arith.constant 0 : index
    %0 = vector.load %arg0[%c0, %c0_0] : memref<32x32xf32, #tpu.memory_space<vmem>>, vector<32x32xf32>
    %c0_1 = arith.constant 0 : index
    %c0_2 = arith.constant 0 : index
    %1 = vector.load %arg1[%c0_1, %c0_2] : memref<16x8xi32, #tpu.memory_space<vmem>>, vector<16x8xi32>
    %c0_3 = arith.constant 0 : index
    %c0_4 = arith.constant 0 : index
    %2 = vector.load %arg2[%c0_3, %c0_4] : memref<168x64xf32, #tpu.memory_space<vmem>>, vector<64x64xf32>
    %c64 = arith.constant 64 : index
    %c0_5 = arith.constant 0 : index
    %3 = vector.load %arg2[%c64, %c0_5] : memref<168x64xf32, #tpu.memory_space<vmem>>, vector<32x64xf32>
    %c96 = arith.constant 96 : index
    %c0_6 = arith.constant 0 : index
    %4 = vector.load %arg2[%c96, %c0_6] : memref<168x64xf32, #tpu.memory_space<vmem>>, vector<1x64xf32>
    %c97 = arith.constant 97 : index
    %c0_7 = arith.constant 0 : index
    %5 = vector.load %arg2[%c97, %c0_7] : memref<168x64xf32, #tpu.memory_space<vmem>>, vector<1x64xf32>
    %c98 = arith.constant 98 : index
    %c0_8 = arith.constant 0 : index
    %6 = vector.load %arg2[%c98, %c0_8] : memref<168x64xf32, #tpu.memory_space<vmem>>, vector<1x64xf32>
    %c99 = arith.constant 99 : index
    %c0_9 = arith.constant 0 : index
    %7 = vector.load %arg2[%c99, %c0_9] : memref<168x64xf32, #tpu.memory_space<vmem>>, vector<1x64xf32>
    %c104 = arith.constant 104 : index
    %c0_10 = arith.constant 0 : index
    %8 = vector.load %arg2[%c104, %c0_10] : memref<168x64xf32, #tpu.memory_space<vmem>>, vector<64x64xf32>
    %cst = arith.constant dense<0.000000e+00> : vector<32x64xf32>
    %9 = tpu.matmul %0, %3, %cst {dimension_numbers = #tpu.dot_dimension_numbers<[1], [0], [0], [1], [0, 0, 1, 1], [], []>} : vector<32x32xf32>, vector<32x64xf32>, vector<32x64xf32> -> vector<32x64xf32>
    %10 = vector.extract_strided_slice %9 {offsets = [0, 0], sizes = [32, 1], strides = [1, 1]} : vector<32x64xf32> to vector<32x1xf32>
    %11 = vector.extract_strided_slice %9 {offsets = [0, 1], sizes = [32, 1], strides = [1, 1]} : vector<32x64xf32> to vector<32x1xf32>
    %cst_11 = arith.constant dense<0xFF800000> : vector<1xf32>
    %12 = vector.multi_reduction <maximumf>, %10, %cst_11 [0] : vector<32x1xf32> to vector<1xf32>
    %13 = vector.shape_cast %12 : vector<1xf32> to vector<1x1xf32>
    %14 = vector.broadcast %13 : vector<1x1xf32> to vector<32x1xf32>
    %15 = arith.subf %10, %14 : vector<32x1xf32>
    %16 = math.exp %15 : vector<32x1xf32>
    %cst_12 = arith.constant dense<0xFF800000> : vector<1xf32>
    %17 = vector.multi_reduction <maximumf>, %11, %cst_12 [0] : vector<32x1xf32> to vector<1xf32>
    %18 = vector.shape_cast %17 : vector<1xf32> to vector<1x1xf32>
    %19 = vector.broadcast %18 : vector<1x1xf32> to vector<32x1xf32>
    %20 = arith.subf %11, %19 : vector<32x1xf32>
    %21 = math.exp %20 : vector<32x1xf32>
    %22 = vector.broadcast %16 : vector<32x1xf32> to vector<32x32xf32>
    %23 = arith.mulf %0, %22 : vector<32x32xf32>
    %24 = vector.broadcast %21 : vector<32x1xf32> to vector<32x32xf32>
    %25 = arith.mulf %0, %24 : vector<32x32xf32>
    %26 = tpu.concatenate %23, %25, %16, %21 in 1 : vector<32x32xf32>, vector<32x32xf32>, vector<32x1xf32>, vector<32x1xf32> -> vector<32x66xf32>
    %27 = vector.extract_strided_slice %1 {offsets = [0, 0], sizes = [16, 1], strides = [1, 1]} : vector<16x8xi32> to vector<16x1xi32>
    %28 = vector.extract_strided_slice %1 {offsets = [0, 2], sizes = [16, 1], strides = [1, 1]} : vector<16x8xi32> to vector<16x1xi32>
    %29 = tpu.concatenate %27, %28 in 0 : vector<16x1xi32>, vector<16x1xi32> -> vector<32x1xi32>
    %30 = vector.extract_strided_slice %1 {offsets = [0, 1], sizes = [16, 1], strides = [1, 1]} : vector<16x8xi32> to vector<16x1xi32>
    %31 = vector.extract_strided_slice %1 {offsets = [0, 3], sizes = [16, 1], strides = [1, 1]} : vector<16x8xi32> to vector<16x1xi32>
    %32 = tpu.concatenate %30, %31 in 0 : vector<16x1xi32>, vector<16x1xi32> -> vector<32x1xi32>
    %33 = vector.extract_strided_slice %1 {offsets = [0, 5], sizes = [16, 1], strides = [1, 1]} : vector<16x8xi32> to vector<16x1xi32>
    %34 = vector.extract_strided_slice %1 {offsets = [0, 5], sizes = [16, 1], strides = [1, 1]} : vector<16x8xi32> to vector<16x1xi32>
    %35 = tpu.concatenate %33, %34 in 0 : vector<16x1xi32>, vector<16x1xi32> -> vector<32x1xi32>
    %c0_i32 = arith.constant 0 : i32
    %36 = vector.broadcast %c0_i32 : i32 to vector<32x1xi32>
    %37 = arith.cmpi sge, %29, %36 : vector<32x1xi32>
    %38 = tpu.iota {dimensions = array<i32: 1>} : vector<32x32xi32>
    %39 = arith.addi %29, %35 : vector<32x1xi32>
    %40 = vector.broadcast %39 : vector<32x1xi32> to vector<32x32xi32>
    %41 = arith.cmpi sge, %38, %40 : vector<32x32xi32>
    %42 = arith.addi %32, %35 : vector<32x1xi32>
    %43 = vector.broadcast %42 : vector<32x1xi32> to vector<32x32xi32>
    %44 = arith.cmpi sle, %38, %43 : vector<32x32xi32>
    %45 = arith.andi %41, %44 : vector<32x32xi1>
    %46 = vector.broadcast %37 : vector<32x1xi1> to vector<32x32xi1>
    %47 = arith.andi %45, %46 : vector<32x32xi1>
    %48 = arith.extui %47 : vector<32x32xi1> to vector<32x32xi32>
    %49 = arith.sitofp %48 : vector<32x32xi32> to vector<32x32xf32>
    %cst_13 = arith.constant dense<0.000000e+00> : vector<32x66xf32>
    %50 = tpu.matmul %49, %26, %cst_13 {dimension_numbers = #tpu.dot_dimension_numbers<[1], [0], [0], [1], [0, 0, 1, 1], [], []>} : vector<32x32xf32>, vector<32x66xf32>, vector<32x66xf32> -> vector<32x66xf32>
    %51 = vector.extract_strided_slice %50 {offsets = [0, 0], sizes = [16, 32], strides = [1, 1]} : vector<32x66xf32> to vector<16x32xf32>
    %52 = vector.extract_strided_slice %50 {offsets = [0, 64], sizes = [16, 1], strides = [1, 1]} : vector<32x66xf32> to vector<16x1xf32>
    %cst_14 = arith.constant 9.99999982E-14 : f32
    %53 = vector.broadcast %cst_14 : f32 to vector<16x1xf32>
    %54 = arith.addf %52, %53 : vector<16x1xf32>
    %55 = vector.broadcast %54 : vector<16x1xf32> to vector<16x32xf32>
    %56 = arith.divf %51, %55 : vector<16x32xf32>
    %57 = vector.extract_strided_slice %50 {offsets = [16, 32], sizes = [16, 32], strides = [1, 1]} : vector<32x66xf32> to vector<16x32xf32>
    %58 = vector.extract_strided_slice %50 {offsets = [16, 65], sizes = [16, 1], strides = [1, 1]} : vector<32x66xf32> to vector<16x1xf32>
    %cst_15 = arith.constant 9.99999982E-14 : f32
    %59 = vector.broadcast %cst_15 : f32 to vector<16x1xf32>
    %60 = arith.addf %58, %59 : vector<16x1xf32>
    %61 = vector.broadcast %60 : vector<16x1xf32> to vector<16x32xf32>
    %62 = arith.divf %57, %61 : vector<16x32xf32>
    %63 = tpu.concatenate %56, %62 in 1 : vector<16x32xf32>, vector<16x32xf32> -> vector<16x64xf32>
    %cst_16 = arith.constant dense<0.000000e+00> : vector<16x64xf32>
    %64 = tpu.matmul %63, %2, %cst_16 {dimension_numbers = #tpu.dot_dimension_numbers<[1], [0], [0], [1], [0, 0, 1, 1], [], []>} : vector<16x64xf32>, vector<64x64xf32>, vector<16x64xf32> -> vector<16x64xf32>
    %65 = vector.broadcast %4 : vector<1x64xf32> to vector<16x64xf32>
    %66 = arith.addf %64, %65 : vector<16x64xf32>
    %67 = math.tanh %66 : vector<16x64xf32>
    %cst_17 = arith.constant dense<0.000000e+00> : vector<16xf32>
    %68 = vector.multi_reduction <add>, %67, %cst_17 [1] : vector<16x64xf32> to vector<16xf32>
    %69 = vector.shape_cast %68 : vector<16xf32> to vector<16x1xf32>
    %cst_18 = arith.constant 6.400000e+01 : f32
    %70 = vector.broadcast %cst_18 : f32 to vector<16x1xf32>
    %71 = arith.divf %69, %70 : vector<16x1xf32>
    %72 = vector.broadcast %71 : vector<16x1xf32> to vector<16x64xf32>
    %73 = arith.subf %67, %72 : vector<16x64xf32>
    %74 = arith.mulf %73, %73 : vector<16x64xf32>
    %cst_19 = arith.constant dense<0.000000e+00> : vector<16xf32>
    %75 = vector.multi_reduction <add>, %74, %cst_19 [1] : vector<16x64xf32> to vector<16xf32>
    %76 = vector.shape_cast %75 : vector<16xf32> to vector<16x1xf32>
    %cst_20 = arith.constant 6.400000e+01 : f32
    %77 = vector.broadcast %cst_20 : f32 to vector<16x1xf32>
    %78 = arith.divf %76, %77 : vector<16x1xf32>
    %79 = vector.broadcast %71 : vector<16x1xf32> to vector<16x64xf32>
    %80 = arith.subf %67, %79 : vector<16x64xf32>
    %cst_21 = arith.constant 9.99999974E-6 : f32
    %81 = vector.broadcast %cst_21 : f32 to vector<16x1xf32>
    %82 = arith.addf %78, %81 : vector<16x1xf32>
    %83 = math.rsqrt %82 : vector<16x1xf32>
    %84 = vector.broadcast %83 : vector<16x1xf32> to vector<16x64xf32>
    %85 = arith.mulf %80, %84 : vector<16x64xf32>
    %86 = vector.broadcast %5 : vector<1x64xf32> to vector<16x64xf32>
    %87 = arith.mulf %85, %86 : vector<16x64xf32>
    %88 = vector.broadcast %6 : vector<1x64xf32> to vector<16x64xf32>
    %89 = arith.addf %87, %88 : vector<16x64xf32>
    %cst_22 = arith.constant dense<0.000000e+00> : vector<16x64xf32>
    %90 = tpu.matmul %89, %8, %cst_22 {dimension_numbers = #tpu.dot_dimension_numbers<[1], [0], [0], [1], [0, 0, 1, 1], [], []>} : vector<16x64xf32>, vector<64x64xf32>, vector<16x64xf32> -> vector<16x64xf32>
    %91 = vector.broadcast %7 : vector<1x64xf32> to vector<16x64xf32>
    %92 = arith.addf %90, %91 : vector<16x64xf32>
    %93 = vector.extract_strided_slice %92 {offsets = [0, 0], sizes = [16, 4], strides = [1, 1]} : vector<16x64xf32> to vector<16x4xf32>
    %cst_23 = arith.constant 0.000000e+00 : f32
    %94 = vector.broadcast %cst_23 : f32 to vector<16x4xf32>
    %95 = arith.subf %94, %93 : vector<16x4xf32>
    %96 = math.exp %95 : vector<16x4xf32>
    %cst_24 = arith.constant 1.000000e+00 : f32
    %97 = vector.broadcast %cst_24 : f32 to vector<16x4xf32>
    %98 = arith.addf %97, %96 : vector<16x4xf32>
    %cst_25 = arith.constant 1.000000e+00 : f32
    %99 = vector.broadcast %cst_25 : f32 to vector<16x4xf32>
    %100 = arith.divf %99, %98 : vector<16x4xf32>
    %101 = vector.extract_strided_slice %1 {offsets = [0, 4], sizes = [16, 1], strides = [1, 1]} : vector<16x8xi32> to vector<16x1xi32>
    %102 = tpu.iota {dimensions = array<i32: 1>} : vector<16x4xi32>
    %103 = vector.broadcast %101 : vector<16x1xi32> to vector<16x4xi32>
    %104 = arith.cmpi eq, %102, %103 : vector<16x4xi32>
    %105 = arith.extui %104 : vector<16x4xi1> to vector<16x4xi32>
    %106 = arith.sitofp %105 : vector<16x4xi32> to vector<16x4xf32>
    %107 = vector.extract_strided_slice %1 {offsets = [0, 0], sizes = [16, 1], strides = [1, 1]} : vector<16x8xi32> to vector<16x1xi32>
    %c-1_i32 = arith.constant -1 : i32
    %108 = vector.broadcast %c-1_i32 : i32 to vector<16x1xi32>
    %109 = arith.cmpi ne, %107, %108 : vector<16x1xi32>
    %110 = arith.extui %109 : vector<16x1xi1> to vector<16x1xi32>
    %111 = arith.sitofp %110 : vector<16x1xi32> to vector<16x1xf32>
    %cst_26 = arith.constant 1.000000e-07 : f32
    %cst_27 = arith.constant 0.99999988 : f32
    %112 = vector.broadcast %cst_26 : f32 to vector<16x4xf32>
    %113 = arith.maximumf %112, %100 : vector<16x4xf32>
    %114 = vector.broadcast %cst_27 : f32 to vector<16x4xf32>
    %115 = arith.minimumf %114, %113 : vector<16x4xf32>
    %116 = math.log %115 : vector<16x4xf32>
    %117 = arith.mulf %106, %116 : vector<16x4xf32>
    %cst_28 = arith.constant 1.000000e+00 : f32
    %118 = vector.broadcast %cst_28 : f32 to vector<16x4xf32>
    %119 = arith.subf %118, %106 : vector<16x4xf32>
    %cst_29 = arith.constant 1.000000e+00 : f32
    %120 = vector.broadcast %cst_29 : f32 to vector<16x4xf32>
    %121 = arith.subf %120, %115 : vector<16x4xf32>
    %122 = math.log %121 : vector<16x4xf32>
    %123 = arith.mulf %119, %122 : vector<16x4xf32>
    %124 = arith.addf %117, %123 : vector<16x4xf32>
    %cst_30 = arith.constant 0.000000e+00 : f32
    %125 = vector.broadcast %cst_30 : f32 to vector<16x4xf32>
    %126 = arith.subf %125, %124 : vector<16x4xf32>
    %127 = vector.broadcast %111 : vector<16x1xf32> to vector<16x4xf32>
    %128 = arith.mulf %126, %127 : vector<16x4xf32>
    %cst_31 = arith.constant dense<0.000000e+00> : vector<16xf32>
    %129 = vector.multi_reduction <add>, %128, %cst_31 [1] : vector<16x4xf32> to vector<16xf32>
    %130 = vector.shape_cast %129 : vector<16xf32> to vector<16x1xf32>
    %cst_32 = arith.constant dense<0.000000e+00> : vector<1xf32>
    %131 = vector.multi_reduction <add>, %130, %cst_32 [0] : vector<16x1xf32> to vector<1xf32>
    %132 = vector.shape_cast %131 : vector<1xf32> to vector<1x1xf32>
    %133 = vector.shape_cast %132 : vector<1x1xf32> to vector<1x1xf32>
    %134 = vector.broadcast %133 : vector<1x1xf32> to vector<16x1xf32>
    %cst_33 = arith.constant 0.000000e+00 : f32
    %135 = vector.broadcast %cst_33 : f32 to vector<16x119xf32>
    %136 = tpu.concatenate %93, %100, %134, %135 in 1 : vector<16x4xf32>, vector<16x4xf32>, vector<16x1xf32>, vector<16x119xf32> -> vector<16x128xf32>
    %c0_34 = arith.constant 0 : index
    %c0_35 = arith.constant 0 : index
    %137 = vector.load %arg3[%c0_34, %c0_35] : memref<16x128xf32, #tpu.memory_space<vmem>>, vector<16x128xf32>
    tpu.vector_store %arg3[%c0_34, %c0_35], %136 {strides = array<i32>} : memref<16x128xf32, #tpu.memory_space<vmem>>, vector<16x128xf32>,
    return
  }
}

</mosaic_0001>

<llo_original>
// kernel: tpu_custom_call.1
$region0: #{tpu_custom_call.1}
  #allocation0 [shape = 'u32[]', space=smem, size = 0x4, offset = 0x4, fixed_abs, tag = 'smem constant byte address 0x4 - core index']
  #allocation1 [shape = 'u32[144,128]{1,0:T(1,128)}', space=vmem, size = 0x12000, scoped, tag = 'internal scratch']
  %s0 = inlined_call_operand.vmem [shape: f32[32,32], index: 0, kind: input, shape index: {}]
  %s1 = inlined_call_operand.vmem [shape: s32[16,8], index: 1, kind: input, shape index: {}]
  %s2 = inlined_call_operand.vmem [shape: f32[168,64], index: 2, kind: input, shape index: {}]
  %s3 = inlined_call_operand.hbm [shape: f32[16,128], index: 3, kind: output, shape index: {}]
  %s4 = sld [smem:[#allocation0]]
  $region22: #{tpu_custom_call.1} parent=0
    _
  %s6 = ssub.s32 1, %s4
  %s7 = scalar_select 0, %s6, %s4
  $region1: #{tpu_custom_call.1} parent=0
    #allocation2 [shape = 'u8[8192]{0}', space=vmem, size = 0x2000, scoped, tag = 'output window, operand 0, single buffered']
    #allocation3 [shape = 's32[1]{0}', space=sflag, size = 0x4, scoped, tag = 'scoped memory for tpu_custom_call.1']
    %8 = vsyncpa [#allocation3], 0
    // Predicated region
    $region2: #{tpu_custom_call.1} parent=1 // pred_check
      _
    $region3: #{tpu_custom_call.1} parent=1 // pred_check_branch
      %10 = sbr.rel (0) target = $region5
    $region4: #{tpu_custom_call.1} parent=1 // pred_region
      _
    $region5: #{tpu_custom_call.1} parent=1 // pred_fallthru
      _
    // Predicated region
    $region6: #{tpu_custom_call.1} parent=1 // pred_check
      _
    $region7: #{tpu_custom_call.1} parent=1 // pred_check_branch
      %12 = sbr.rel (0) target = $region9
    $region8: #{tpu_custom_call.1} parent=1 // pred_region
      _
    $region9: #{tpu_custom_call.1} parent=1 // pred_fallthru
      _
    // Predicated region
    $region10: #{tpu_custom_call.1} parent=1 // pred_check
      _
    $region11: #{tpu_custom_call.1} parent=1 // pred_check_branch
      %14 = sbr.rel (0) target = $region13
    $region12: #{tpu_custom_call.1} parent=1 // pred_region
      _
    $region13: #{tpu_custom_call.1} parent=1 // pred_fallthru
      _
    %v15 = vld [vmem:[%s0] sm:$0xff]
    %v16 = vld [vmem:[%s0 + $0x8] sm:$0xff]
    %v17 = vld [vmem:[%s0 + $0x10] sm:$0xff]
    %v18 = vld [vmem:[%s0 + $0x18] sm:$0xff]
    %v19 = vld [vmem:[%s1] sm:$0xff]
    %v20 = vld [vmem:[%s1 + $0x8] sm:$0xff]
    %v21 = vld [vmem:[%s2] sm:$0xff]
    %v22 = vld [vmem:[%s2 + $0x8] sm:$0xff]
    %v23 = vld [vmem:[%s2 + $0x10] sm:$0xff]
    %v24 = vld [vmem:[%s2 + $0x18] sm:$0xff]
    %v25 = vld [vmem:[%s2 + $0x20] sm:$0xff]
    %v26 = vld [vmem:[%s2 + $0x28] sm:$0xff]
    %v27 = vld [vmem:[%s2 + $0x30] sm:$0xff]
    %v28 = vld [vmem:[%s2 + $0x38] sm:$0xff]
    %v29 = vld [vmem:[%s2 + $0x40] sm:$0xff]
    %v30 = vld [vmem:[%s2 + $0x48] sm:$0xff]
    %v31 = vld [vmem:[%s2 + $0x50] sm:$0xff]
    %v32 = vld [vmem:[%s2 + $0x58] sm:$0xff]
    %v33 = vld [vmem:[%s2 + $0x60] sm:$0x1]
    %v34 = vld [vmem:[%s2 + $0x61] sm:$0x1]
    %v35 = vld [vmem:[%s2 + $0x62] sm:$0x1]
    %v36 = vld [vmem:[%s2 + $0x63] sm:$0x1]
    %v37 = vld [vmem:[%s2 + $0x68] sm:$0xff]
    %v38 = vld [vmem:[%s2 + $0x70] sm:$0xff]
    %v39 = vld [vmem:[%s2 + $0x78] sm:$0xff]
    %v40 = vld [vmem:[%s2 + $0x80] sm:$0xff]
    %v41 = vld [vmem:[%s2 + $0x88] sm:$0xff]
    %v42 = vld [vmem:[%s2 + $0x90] sm:$0xff]
    %v43 = vld [vmem:[%s2 + $0x98] sm:$0xff]
    %v44 = vld [vmem:[%s2 + $0xa0] sm:$0xff]
    %vm45 = vcmask 261120
    %v47 = vsel %vm45, %v15, 0
    %v50 = vsel %vm45, %v16, 0
    %v53 = vsel %vm45, %v17, 0
    %v56 = vsel %vm45, %v18, 0
    %58 = vmatprep.subr.mxu0 0.0
    %59 = vmatpush1.msra.mxu0 %v29
    %60 = vmatprep.subr.mxu0 0.0
    %61 = vmatpush1.msra.mxu0 %v30
    %62 = vmatprep.subr.mxu0 0.0
    %63 = vmatpush1.msra.mxu0 %v31
    %64 = vmatprep.subr.mxu0 0.0
    %65 = vmatpush1.msra.mxu0 %v32
    %66 = vmatprep.subr.mxu0 0.0
    %67 = vmatpush1.msra.mxu0 0.0
    %68 = vmatprep.subr.mxu0 0.0
    %69 = vmatpush1.msra.mxu0 0.0
    %70 = vmatprep.subr.mxu0 0.0
    %71 = vmatpush1.msra.mxu0 0.0
    %72 = vmatprep.subr.mxu0 0.0
    %73 = vmatpush1.msra.mxu0 0.0
    %74 = vmatprep.subr.mxu0 0.0
    %75 = vmatpush1.msra.mxu0 0.0
    %76 = vmatprep.subr.mxu0 0.0
    %77 = vmatpush1.msra.mxu0 0.0
    %78 = vmatprep.subr.mxu0 0.0
    %79 = vmatpush1.msra.mxu0 0.0
    %80 = vmatprep.subr.mxu0 0.0
    %81 = vmatpush1.msra.mxu0 0.0
    %82 = vmatprep.subr.mxu0 0.0
    %83 = vmatpush1.msra.mxu0 0.0
    %84 = vmatprep.subr.mxu0 0.0
    %85 = vmatpush1.msra.mxu0 0.0
    %86 = vmatprep.subr.mxu0 0.0
    %87 = vmatpush1.msra.mxu0 0.0
    %88 = vmatprep.subr.mxu0 0.0
    %89 = vmatpush1.msra.mxu0 0.0
    %90 = vmatprep.subr.mxu0 0.0
    %91 = vmatpush1.msra.mxu0 0.0
    %92 = vmatprep.subr.mxu0 0.0
    %93 = vmatpush1.msra.mxu0 0.0
    %94 = vmatprep.subr.mxu0 0.0
    %95 = vmatpush1.msra.mxu0 0.0
    %96 = vmatprep.subr.mxu0 0.0
    %97 = vmatpush1.msra.mxu0 0.0
    %98 = vmatprep.subr.mxu0 0.0
    %99 = vmatpush1.msra.mxu0 0.0
    %100 = vmatprep.subr.mxu0 0.0
    %101 = vmatpush1.msra.mxu0 0.0
    %102 = vmatprep.subr.mxu0 0.0
    %103 = vmatpush1.msra.mxu0 0.0
    %104 = vmatprep.subr.mxu0 0.0
    %105 = vmatpush1.msra.mxu0 0.0
    %106 = vmatprep.subr.mxu0 0.0
    %107 = vmatpush1.msra.mxu0 0.0
    %108 = vmatprep.subr.mxu0 0.0
    %109 = vmatpush1.msra.mxu0 0.0
    %110 = vmatprep.subr.mxu0 0.0
    %111 = vmatpush1.msra.mxu0 0.0
    %112 = vmatprep.subr.mxu0 0.0
    %113 = vmatpush1.msra.mxu0 0.0
    %114 = vmatprep.subr.mxu0 0.0
    %115 = vmatpush1.msra.mxu0 0.0
    %116 = vmatprep.subr.mxu0 0.0
    %117 = vmatpush1.msra.mxu0 0.0
    %118 = vmatprep.subr.mxu0 0.0
    %119 = vmatpush1.msra.mxu0 0.0
    %120 = vmatprep.subr.mxu0 0.0
    %121 = vmatpush1.msra.mxu0 0.0
    %122 = vmatprep.mubr.f32.mxu0 0.0
    %123 = vmatmul.mubr.f32.gmra.mrb[0].mxu0 %v47
    %v124 = vpop.f32.mrb[0].mxu0
    %v125 = vadd.f32 0.0, %v124
    %v126 = vpop.f32.mrb[0].mxu0
    %127 = vmatprep.mubr.f32.mxu0 0.0
    %128 = vmatmul.mubr.f32.gmra.mrb[0].mxu0 %v50
    %v129 = vpop.f32.mrb[0].mxu0
    %v130 = vadd.f32 0.0, %v129
    %v131 = vpop.f32.mrb[0].mxu0
    %132 = vmatprep.mubr.f32.mxu0 0.0
    %133 = vmatmul.mubr.f32.gmra.mrb[0].mxu0 %v53
    %v134 = vpop.f32.mrb[0].mxu0
    %v135 = vadd.f32 0.0, %v134
    %v136 = vpop.f32.mrb[0].mxu0
    %137 = vmatprep.mubr.f32.mxu0 0.0
    %138 = vmatmul.mubr.f32.gmra.mrb[0].mxu0 %v56
    %v139 = vpop.f32.mrb[0].mxu0
    %v140 = vadd.f32 0.0, %v139
    %v141 = vpop.f32.mrb[0].mxu0
    %142 = vdwg.mxu0
    %vm143 = vcmask 7168
    %v144 = vsel %vm143, %v125, -inf
    %v145 = vsel %vm143, %v130, -inf
    %v146 = vsel %vm143, %v135, -inf
    %v147 = vsel %vm143, %v140, -inf
    %v148 = vmax.f32 %v144, %v145
    %v149 = vmax.f32 %v146, %v147
    %v150 = vmax.f32 %v148, %v149
    %v151 = vrot.slane %v150, 4
    %v152 = vmax.f32 %v150, %v151
    %v153 = vrot.slane %v152, 2
    %v154 = vmax.f32 %v152, %v153
    %v155 = vrot.slane %v154, 1
    %v156 = vmax.f32 %v154, %v155
    %v157 = vsub.f32 %v125, %v156
    %v158 = vsub.f32 %v130, %v156
    %v159 = vsub.f32 %v135, %v156
    %v160 = vsub.f32 %v140, %v156
    %v161 = vmul.f32 %v157, 1.442695
    %v162 = vpow.pop %v161
    %v163 = vmul.f32 %v158, 1.442695
    %v164 = vpow.pop %v163
    %v165 = vmul.f32 %v159, 1.442695
    %v166 = vpow.pop %v165
    %v167 = vmul.f32 %v160, 1.442695
    %v168 = vpow.pop %v167
    %vm169 = vcmask 15368
    %v170 = vsel %vm169, %v125, -inf
    %v171 = vsel %vm169, %v130, -inf
    %v172 = vsel %vm169, %v135, -inf
    %v173 = vsel %vm169, %v140, -inf
    %v174 = vmax.f32 %v170, %v171
    %v175 = vmax.f32 %v172, %v173
    %v176 = vmax.f32 %v174, %v175
    %v177 = vrot.slane %v176, 4
    %v178 = vmax.f32 %v176, %v177
    %v179 = vrot.slane %v178, 2
    %v180 = vmax.f32 %v178, %v179
    %v181 = vrot.slane %v180, 1
    %v182 = vmax.f32 %v180, %v181
    %v183 = vsub.f32 %v125, %v182
    %v184 = vsub.f32 %v130, %v182
    %v185 = vsub.f32 %v135, %v182
    %v186 = vsub.f32 %v140, %v182
    %v187 = vmul.f32 %v183, 1.442695
    %v188 = vpow.pop %v187
    %v189 = vmul.f32 %v184, 1.442695
    %v190 = vpow.pop %v189
    %v191 = vmul.f32 %v185, 1.442695
    %v192 = vpow.pop %v191
    %v193 = vmul.f32 %v186, 1.442695
    %v194 = vpow.pop %v193
    %196 = vset.pattern.permute.xlu0 0
    %197 = vperm.xlu0 %196, %v162
    %v198 = vpop.permute.xlu0 %197
    %201 = vset.pattern.permute.xlu0 0
    %202 = vperm.xlu0 %201, %v164
    %v203 = vpop.permute.xlu0 %202
    %206 = vset.pattern.permute.xlu0 0
    %207 = vperm.xlu0 %206, %v166
    %v208 = vpop.permute.xlu0 %207
    %211 = vset.pattern.permute.xlu0 0
    %212 = vperm.xlu0 %211, %v168
    %v213 = vpop.permute.xlu0 %212
    %v215 = vmul.f32 %v15, %v198
    %v216 = vmul.f32 %v16, %v203
    %v217 = vmul.f32 %v17, %v208
    %v218 = vmul.f32 %v18, %v213
    %220 = vset.pattern.permute.xlu0 1
    %221 = vperm.xlu0 %220, %v188
    %v222 = vpop.permute.xlu0 %221
    %225 = vset.pattern.permute.xlu0 1
    %226 = vperm.xlu0 %225, %v190
    %v227 = vpop.permute.xlu0 %226
    %230 = vset.pattern.permute.xlu0 1
    %231 = vperm.xlu0 %230, %v192
    %v232 = vpop.permute.xlu0 %231
    %235 = vset.pattern.permute.xlu0 1
    %236 = vperm.xlu0 %235, %v194
    %v237 = vpop.permute.xlu0 %236
    %v239 = vmul.f32 %v15, %v222
    %v240 = vmul.f32 %v16, %v227
    %v241 = vmul.f32 %v17, %v232
    %v242 = vmul.f32 %v18, %v237
    %247 = vrot.lane.b32.xlu0 %v239, 32
    %v248 = vpop.permute.xlu0 %247
    %249 = vrot.lane.b32.xlu0 %v240, 32
    %v250 = vpop.permute.xlu0 %249
    %251 = vrot.lane.b32.xlu0 %v241, 32
    %v252 = vpop.permute.xlu0 %251
    %253 = vrot.lane.b32.xlu0 %v242, 32
    %v254 = vpop.permute.xlu0 %253
    %259 = vrot.lane.b32.xlu0 %v162, 64
    %v260 = vpop.permute.xlu0 %259
    %261 = vrot.lane.b32.xlu0 %v164, 64
    %v262 = vpop.permute.xlu0 %261
    %263 = vrot.lane.b32.xlu0 %v166, 64
    %v264 = vpop.permute.xlu0 %263
    %265 = vrot.lane.b32.xlu0 %v168, 64
    %v266 = vpop.permute.xlu0 %265
    %271 = vrot.lane.b32.xlu0 %v188, 64
    %v272 = vpop.permute.xlu0 %271
    %273 = vrot.lane.b32.xlu0 %v190, 64
    %v274 = vpop.permute.xlu0 %273
    %275 = vrot.lane.b32.xlu0 %v192, 64
    %v276 = vpop.permute.xlu0 %275
    %277 = vrot.lane.b32.xlu0 %v194, 64
    %v278 = vpop.permute.xlu0 %277
    %v283 = vsel %vm45, %v215, %v248
    %v284 = vsel %vm45, %v216, %v250
    %v285 = vsel %vm45, %v217, %v252
    %v286 = vsel %vm45, %v218, %v254
    %vm287 = vcmask 523264
    %v288 = vsel %vm287, %v283, %v260
    %v289 = vsel %vm287, %v284, %v262
    %v290 = vsel %vm287, %v285, %v264
    %v291 = vsel %vm287, %v286, %v266
    %vm292 = vcmask 531456
    %v293 = vsel %vm292, %v288, %v272
    %v294 = vsel %vm292, %v289, %v274
    %v295 = vsel %vm292, %v290, %v276
    %v296 = vsel %vm292, %v291, %v278
    %297 = vrot.lane.b32.xlu0 %v19, 126
    %v298 = vpop.permute.xlu0 %297
    %299 = vrot.lane.b32.xlu0 %v20, 126
    %v300 = vpop.permute.xlu0 %299
    %vm301 = vcmp.ge.s32.totalorder %v19, 0
    %vm302 = vcmp.ge.s32.totalorder %v20, 0
    %vm303 = vcmp.ge.s32.totalorder %v298, 0
    %vm304 = vcmp.ge.s32.totalorder %v300, 0
    %v305 = vlaneseq
    %v306 = vand.u32 %v305, 127
    %307 = vrot.lane.b32.xlu0 %v19, 123
    %v308 = vpop.permute.xlu0 %307
    %309 = vrot.lane.b32.xlu0 %v20, 123
    %v310 = vpop.permute.xlu0 %309
    %v311 = vadd.s32 %v19, %v308
    %v312 = vadd.s32 %v20, %v310
    %v313 = vadd.s32 %v298, %v308
    %v314 = vadd.s32 %v300, %v310
    %315 = vset.pattern.permute.xlu0 0
    %316 = vperm.xlu0 %315, %v311
    %v317 = vpop.permute.xlu0 %316
    %318 = vset.pattern.permute.xlu0 0
    %319 = vperm.xlu0 %318, %v312
    %v320 = vpop.permute.xlu0 %319
    %321 = vset.pattern.permute.xlu0 0
    %322 = vperm.xlu0 %321, %v313
    %v323 = vpop.permute.xlu0 %322
    %324 = vset.pattern.permute.xlu0 0
    %325 = vperm.xlu0 %324, %v314
    %v326 = vpop.permute.xlu0 %325
    %vm327 = vcmp.ge.s32.totalorder %v306, %v317
    %vm328 = vcmp.ge.s32.totalorder %v306, %v320
    %vm329 = vcmp.ge.s32.totalorder %v306, %v323
    %vm330 = vcmp.ge.s32.totalorder %v306, %v326
    %331 = vrot.lane.b32.xlu0 %v19, 124
    %v332 = vpop.permute.xlu0 %331
    %333 = vrot.lane.b32.xlu0 %v20, 124
    %v334 = vpop.permute.xlu0 %333
    %v335 = vadd.s32 %v19, %v332
    %v336 = vadd.s32 %v20, %v334
    %v337 = vadd.s32 %v298, %v332
    %v338 = vadd.s32 %v300, %v334
    %339 = vset.pattern.permute.xlu0 1
    %340 = vperm.xlu0 %339, %v335
    %v341 = vpop.permute.xlu0 %340
    %342 = vset.pattern.permute.xlu0 1
    %343 = vperm.xlu0 %342, %v336
    %v344 = vpop.permute.xlu0 %343
    %345 = vset.pattern.permute.xlu0 1
    %346 = vperm.xlu0 %345, %v337
    %v347 = vpop.permute.xlu0 %346
    %348 = vset.pattern.permute.xlu0 1
    %349 = vperm.xlu0 %348, %v338
    %v350 = vpop.permute.xlu0 %349
    %vm351 = vcmp.le.s32.totalorder %v306, %v341
    %vm352 = vcmp.le.s32.totalorder %v306, %v344
    %vm353 = vcmp.le.s32.totalorder %v306, %v347
    %vm354 = vcmp.le.s32.totalorder %v306, %v350
    %vm355 = vmand %vm327, %vm351
    %vm356 = vmand %vm328, %vm352
    %vm357 = vmand %vm329, %vm353
    %vm358 = vmand %vm330, %vm354
    %v359 = vsel %vm301, 1, 0
    %v360 = vsel %vm302, 1, 0
    %v361 = vsel %vm303, 1, 0
    %v362 = vsel %vm304, 1, 0
    %363 = vset.pattern.permute.xlu0 0
    %364 = vperm.xlu0 %363, %v359
    %v365 = vpop.permute.xlu0 %364
    %366 = vset.pattern.permute.xlu0 0
    %367 = vperm.xlu0 %366, %v360
    %v368 = vpop.permute.xlu0 %367
    %369 = vset.pattern.permute.xlu0 0
    %370 = vperm.xlu0 %369, %v361
    %v371 = vpop.permute.xlu0 %370
    %372 = vset.pattern.permute.xlu0 0
    %373 = vperm.xlu0 %372, %v362
    %v374 = vpop.permute.xlu0 %373
    %vm375 = vcmp.eq.s32.totalorder %v365, 1
    %vm376 = vcmp.eq.s32.totalorder %v368, 1
    %vm377 = vcmp.eq.s32.totalorder %v371, 1
    %vm378 = vcmp.eq.s32.totalorder %v374, 1
    %vm379 = vmand %vm355, %vm375
    %vm380 = vmand %vm356, %vm376
    %vm381 = vmand %vm357, %vm377
    %vm382 = vmand %vm358, %vm378
    %v383 = vsel %vm379, 1, 0
    %v384 = vsel %vm380, 1, 0
    %v385 = vsel %vm381, 1, 0
    %v386 = vsel %vm382, 1, 0
    %v387 = vcvt.s32.f32 %v383
    %v388 = vcvt.s32.f32 %v384
    %v389 = vcvt.s32.f32 %v385
    %v390 = vcvt.s32.f32 %v386
    %v392 = vsel %vm45, %v387, 0
    %v395 = vsel %vm45, %v388, 0
    %v398 = vsel %vm45, %v389, 0
    %v401 = vsel %vm45, %v390, 0
    %403 = vmatprep.subr.mxu0 0.0
    %404 = vmatpush1.msra.mxu0 %v293
    %405 = vmatprep.subr.mxu0 0.0
    %406 = vmatpush1.msra.mxu0 %v294
    %407 = vmatprep.subr.mxu0 0.0
    %408 = vmatpush1.msra.mxu0 %v295
    %409 = vmatprep.subr.mxu0 0.0
    %410 = vmatpush1.msra.mxu0 %v296
    %411 = vmatprep.subr.mxu0 0.0
    %412 = vmatpush1.msra.mxu0 0.0
    %413 = vmatprep.subr.mxu0 0.0
    %414 = vmatpush1.msra.mxu0 0.0
    %415 = vmatprep.subr.mxu0 0.0
    %416 = vmatpush1.msra.mxu0 0.0
    %417 = vmatprep.subr.mxu0 0.0
    %418 = vmatpush1.msra.mxu0 0.0
    %419 = vmatprep.subr.mxu0 0.0
    %420 = vmatpush1.msra.mxu0 0.0
    %421 = vmatprep.subr.mxu0 0.0
    %422 = vmatpush1.msra.mxu0 0.0
    %423 = vmatprep.subr.mxu0 0.0
    %424 = vmatpush1.msra.mxu0 0.0
    %425 = vmatprep.subr.mxu0 0.0
    %426 = vmatpush1.msra.mxu0 0.0
    %427 = vmatprep.subr.mxu0 0.0
    %428 = vmatpush1.msra.mxu0 0.0
    %429 = vmatprep.subr.mxu0 0.0
    %430 = vmatpush1.msra.mxu0 0.0
    %431 = vmatprep.subr.mxu0 0.0
    %432 = vmatpush1.msra.mxu0 0.0
    %433 = vmatprep.subr.mxu0 0.0
    %434 = vmatpush1.msra.mxu0 0.0
    %435 = vmatprep.subr.mxu0 0.0
    %436 = vmatpush1.msra.mxu0 0.0
    %437 = vmatprep.subr.mxu0 0.0
    %438 = vmatpush1.msra.mxu0 0.0
    %439 = vmatprep.subr.mxu0 0.0
    %440 = vmatpush1.msra.mxu0 0.0
    %441 = vmatprep.subr.mxu0 0.0
    %442 = vmatpush1.msra.mxu0 0.0
    %443 = vmatprep.subr.mxu0 0.0
    %444 = vmatpush1.msra.mxu0 0.0
    %445 = vmatprep.subr.mxu0 0.0
    %446 = vmatpush1.msra.mxu0 0.0
    %447 = vmatprep.subr.mxu0 0.0
    %448 = vmatpush1.msra.mxu0 0.0
    %449 = vmatprep.subr.mxu0 0.0
    %450 = vmatpush1.msra.mxu0 0.0
    %451 = vmatprep.subr.mxu0 0.0
    %452 = vmatpush1.msra.mxu0 0.0
    %453 = vmatprep.subr.mxu0 0.0
    %454 = vmatpush1.msra.mxu0 0.0
    %455 = vmatprep.subr.mxu0 0.0
    %456 = vmatpush1.msra.mxu0 0.0
    %457 = vmatprep.subr.mxu0 0.0
    %458 = vmatpush1.msra.mxu0 0.0
    %459 = vmatprep.subr.mxu0 0.0
    %460 = vmatpush1.msra.mxu0 0.0
    %461 = vmatprep.subr.mxu0 0.0
    %462 = vmatpush1.msra.mxu0 0.0
    %463 = vmatprep.subr.mxu0 0.0
    %464 = vmatpush1.msra.mxu0 0.0
    %465 = vmatprep.subr.mxu0 0.0
    %466 = vmatpush1.msra.mxu0 0.0
    %467 = vmatprep.mubr.f32.mxu0 0.0
    %468 = vmatmul.mubr.f32.gmra.mrb[0].mxu0 %v392
    %v469 = vpop.f32.mrb[0].mxu0
    %v470 = vadd.f32 0.0, %v469
    %v471 = vpop.f32.mrb[0].mxu0
    %472 = vmatprep.mubr.f32.mxu0 0.0
    %473 = vmatmul.mubr.f32.gmra.mrb[0].mxu0 %v395
    %v474 = vpop.f32.mrb[0].mxu0
    %v475 = vadd.f32 0.0, %v474
    %v476 = vpop.f32.mrb[0].mxu0
    %477 = vmatprep.mubr.f32.mxu0 0.0
    %478 = vmatmul.mubr.f32.gmra.mrb[0].mxu0 %v398
    %v479 = vpop.f32.mrb[0].mxu0
    %v480 = vadd.f32 0.0, %v479
    %v481 = vpop.f32.mrb[0].mxu0
    %482 = vmatprep.mubr.f32.mxu0 0.0
    %483 = vmatmul.mubr.f32.gmra.mrb[0].mxu0 %v401
    %v484 = vpop.f32.mrb[0].mxu0
    %v485 = vadd.f32 0.0, %v484
    %v486 = vpop.f32.mrb[0].mxu0
    %487 = vdwg.mxu0
    %v488 = vadd.f32 %v470, 1e-13
    %v489 = vadd.f32 %v475, 1e-13
    %491 = vset.pattern.permute.xlu0 64
    %492 = vperm.xlu0 %491, %v488
    %v493 = vpop.permute.xlu0 %492
    %496 = vset.pattern.permute.xlu0 64
    %497 = vperm.xlu0 %496, %v489
    %v498 = vpop.permute.xlu0 %497
    %v500 = vrcp.pop %v493
    %v501 = vmul.f32 %v470, %v500
    %v502 = vrcp.pop %v498
    %v503 = vmul.f32 %v475, %v502
    %v504 = vadd.f32 %v480, 1e-13
    %v505 = vadd.f32 %v485, 1e-13
    %507 = vset.pattern.permute.xlu0 65
    %508 = vperm.xlu0 %507, %v504
    %v509 = vpop.permute.xlu0 %508
    %512 = vset.pattern.permute.xlu0 65
    %513 = vperm.xlu0 %512, %v505
    %v514 = vpop.permute.xlu0 %513
    %v516 = vrcp.pop %v509
    %v517 = vmul.f32 %v480, %v516
    %v518 = vrcp.pop %v514
    %v519 = vmul.f32 %v485, %v518
    %v520 = vsel %vm45, %v501, %v517
    %v521 = vsel %vm45, %v503, %v519
    %v522 = vlaneseq
    %v523 = vshrl.u32 %v522, 7
    %v524 = vsub.s32 0, %v523
    %v525 = vrot.slane %v33, %v524
    %v527 = vsel %vm287, %v520, 0
    %v530 = vsel %vm287, %v521, 0
    %532 = vmatprep.subr.mxu0 0.0
    %533 = vmatpush1.msra.mxu0 %v21
    %534 = vmatprep.subr.mxu0 0.0
    %535 = vmatpush1.msra.mxu0 %v22
    %536 = vmatprep.subr.mxu0 0.0
    %537 = vmatpush1.msra.mxu0 %v23
    %538 = vmatprep.subr.mxu0 0.0
    %539 = vmatpush1.msra.mxu0 %v24
    %540 = vmatprep.subr.mxu0 0.0
    %541 = vmatpush1.msra.mxu0 %v25
    %542 = vmatprep.subr.mxu0 0.0
    %543 = vmatpush1.msra.mxu0 %v26
    %544 = vmatprep.subr.mxu0 0.0
    %545 = vmatpush1.msra.mxu0 %v27
    %546 = vmatprep.subr.mxu0 0.0
    %547 = vmatpush1.msra.mxu0 %v28
    %548 = vmatprep.subr.mxu0 0.0
    %549 = vmatpush1.msra.mxu0 0.0
    %550 = vmatprep.subr.mxu0 0.0
    %551 = vmatpush1.msra.mxu0 0.0
    %552 = vmatprep.subr.mxu0 0.0
    %553 = vmatpush1.msra.mxu0 0.0
    %554 = vmatprep.subr.mxu0 0.0
    %555 = vmatpush1.msra.mxu0 0.0
    %556 = vmatprep.subr.mxu0 0.0
    %557 = vmatpush1.msra.mxu0 0.0
    %558 = vmatprep.subr.mxu0 0.0
    %559 = vmatpush1.msra.mxu0 0.0
    %560 = vmatprep.subr.mxu0 0.0
    %561 = vmatpush1.msra.mxu0 0.0
    %562 = vmatprep.subr.mxu0 0.0
    %563 = vmatpush1.msra.mxu0 0.0
    %564 = vmatprep.subr.mxu0 0.0
    %565 = vmatpush1.msra.mxu0 0.0
    %566 = vmatprep.subr.mxu0 0.0
    %567 = vmatpush1.msra.mxu0 0.0
    %568 = vmatprep.subr.mxu0 0.0
    %569 = vmatpush1.msra.mxu0 0.0
    %570 = vmatprep.subr.mxu0 0.0
    %571 = vmatpush1.msra.mxu0 0.0
    %572 = vmatprep.subr.mxu0 0.0
    %573 = vmatpush1.msra.mxu0 0.0
    %574 = vmatprep.subr.mxu0 0.0
    %575 = vmatpush1.msra.mxu0 0.0
    %576 = vmatprep.subr.mxu0 0.0
    %577 = vmatpush1.msra.mxu0 0.0
    %578 = vmatprep.subr.mxu0 0.0
    %579 = vmatpush1.msra.mxu0 0.0
    %580 = vmatprep.subr.mxu0 0.0
    %581 = vmatpush1.msra.mxu0 0.0
    %582 = vmatprep.subr.mxu0 0.0
    %583 = vmatpush1.msra.mxu0 0.0
    %584 = vmatprep.subr.mxu0 0.0
    %585 = vmatpush1.msra.mxu0 0.0
    %586 = vmatprep.subr.mxu0 0.0
    %587 = vmatpush1.msra.mxu0 0.0
    %588 = vmatprep.subr.mxu0 0.0
    %589 = vmatpush1.msra.mxu0 0.0
    %590 = vmatprep.subr.mxu0 0.0
    %591 = vmatpush1.msra.mxu0 0.0
    %592 = vmatprep.subr.mxu0 0.0
    %593 = vmatpush1.msra.mxu0 0.0
    %594 = vmatprep.subr.mxu0 0.0
    %595 = vmatpush1.msra.mxu0 0.0
    %596 = vmatprep.mubr.f32.mxu0 0.0
    %597 = vmatmul.mubr.f32.gmra.mrb[0].mxu0 %v527
    %v598 = vpop.f32.mrb[0].mxu0
    %v599 = vadd.f32 %v525, %v598
    %v600 = vpop.f32.mrb[0].mxu0
    %601 = vmatprep.mubr.f32.mxu0 0.0
    %602 = vmatmul.mubr.f32.gmra.mrb[0].mxu0 %v530
    %v603 = vpop.f32.mrb[0].mxu0
    %v604 = vadd.f32 %v525, %v603
    %v605 = vpop.f32.mrb[0].mxu0
    %606 = vdwg.mxu0
    %v607 = vtanh.pop %v599
    %v608 = vtanh.pop %v604
    %v609 = vsel %vm287, %v607, 0.0
    %610 = vadd.xlane.f32.xlu0 %v609
    %v611 = vpop.xlane.xlu0 %610
    %v612 = vsel %vm287, %v608, 0.0
    %613 = vadd.xlane.f32.xlu0 %v612
    %v614 = vpop.xlane.xlu0 %613
    %v615 = vrcp.pop 64.0
    %v616 = vmul.f32 %v611, %v615
    %v617 = vmul.f32 %v614, %v615
    %v618 = vsub.f32 %v607, %v616
    %v619 = vsub.f32 %v608, %v617
    %v620 = vmul.f32 %v618, %v618
    %v621 = vmul.f32 %v619, %v619
    %v622 = vsel %vm287, %v620, 0.0
    %623 = vadd.xlane.f32.xlu0 %v622
    %v624 = vpop.xlane.xlu0 %623
    %v625 = vsel %vm287, %v621, 0.0
    %626 = vadd.xlane.f32.xlu0 %v625
    %v627 = vpop.xlane.xlu0 %626
    %v628 = vmul.f32 %v624, %v615
    %v629 = vmul.f32 %v627, %v615
    %v630 = vadd.f32 %v628, 1e-05
    %v631 = vadd.f32 %v629, 1e-05
    %v632 = vrsqrt.pop %v630
    %v633 = vrsqrt.pop %v631
    %v634 = vmul.f32 %v618, %v632
    %v635 = vmul.f32 %v619, %v633
    %v636 = vlaneseq
    %v637 = vshrl.u32 %v636, 7
    %v638 = vsub.s32 0, %v637
    %v639 = vrot.slane %v34, %v638
    %v640 = vmul.f32 %v634, %v639
    %v641 = vmul.f32 %v635, %v639
    %v642 = vlaneseq
    %v643 = vshrl.u32 %v642, 7
    %v644 = vsub.s32 0, %v643
    %v645 = vrot.slane %v35, %v644
    %v646 = vadd.f32 %v640, %v645
    %v647 = vadd.f32 %v641, %v645
    %v648 = vlaneseq
    %v649 = vshrl.u32 %v648, 7
    %v650 = vsub.s32 0, %v649
    %v651 = vrot.slane %v36, %v650
    %v653 = vsel %vm287, %v646, 0
    %v656 = vsel %vm287, %v647, 0
    %658 = vmatprep.subr.mxu0 0.0
    %659 = vmatpush1.msra.mxu0 %v37
    %660 = vmatprep.subr.mxu0 0.0
    %661 = vmatpush1.msra.mxu0 %v38
    %662 = vmatprep.subr.mxu0 0.0
    %663 = vmatpush1.msra.mxu0 %v39
    %664 = vmatprep.subr.mxu0 0.0
    %665 = vmatpush1.msra.mxu0 %v40
    %666 = vmatprep.subr.mxu0 0.0
    %667 = vmatpush1.msra.mxu0 %v41
    %668 = vmatprep.subr.mxu0 0.0
    %669 = vmatpush1.msra.mxu0 %v42
    %670 = vmatprep.subr.mxu0 0.0
    %671 = vmatpush1.msra.mxu0 %v43
    %672 = vmatprep.subr.mxu0 0.0
    %673 = vmatpush1.msra.mxu0 %v44
    %674 = vmatprep.subr.mxu0 0.0
    %675 = vmatpush1.msra.mxu0 0.0
    %676 = vmatprep.subr.mxu0 0.0
    %677 = vmatpush1.msra.mxu0 0.0
    %678 = vmatprep.subr.mxu0 0.0
    %679 = vmatpush1.msra.mxu0 0.0
    %680 = vmatprep.subr.mxu0 0.0
    %681 = vmatpush1.msra.mxu0 0.0
    %682 = vmatprep.subr.mxu0 0.0
    %683 = vmatpush1.msra.mxu0 0.0
    %684 = vmatprep.subr.mxu0 0.0
    %685 = vmatpush1.msra.mxu0 0.0
    %686 = vmatprep.subr.mxu0 0.0
    %687 = vmatpush1.msra.mxu0 0.0
    %688 = vmatprep.subr.mxu0 0.0
    %689 = vmatpush1.msra.mxu0 0.0
    %690 = vmatprep.subr.mxu0 0.0
    %691 = vmatpush1.msra.mxu0 0.0
    %692 = vmatprep.subr.mxu0 0.0
    %693 = vmatpush1.msra.mxu0 0.0
    %694 = vmatprep.subr.mxu0 0.0
    %695 = vmatpush1.msra.mxu0 0.0
    %696 = vmatprep.subr.mxu0 0.0
    %697 = vmatpush1.msra.mxu0 0.0
    %698 = vmatprep.subr.mxu0 0.0
    %699 = vmatpush1.msra.mxu0 0.0
    %700 = vmatprep.subr.mxu0 0.0
    %701 = vmatpush1.msra.mxu0 0.0
    %702 = vmatprep.subr.mxu0 0.0
    %703 = vmatpush1.msra.mxu0 0.0
    %704 = vmatprep.subr.mxu0 0.0
    %705 = vmatpush1.msra.mxu0 0.0
    %706 = vmatprep.subr.mxu0 0.0
    %707 = vmatpush1.msra.mxu0 0.0
    %708 = vmatprep.subr.mxu0 0.0
    %709 = vmatpush1.msra.mxu0 0.0
    %710 = vmatprep.subr.mxu0 0.0
    %711 = vmatpush1.msra.mxu0 0.0
    %712 = vmatprep.subr.mxu0 0.0
    %713 = vmatpush1.msra.mxu0 0.0
    %714 = vmatprep.subr.mxu0 0.0
    %715 = vmatpush1.msra.mxu0 0.0
    %716 = vmatprep.subr.mxu0 0.0
    %717 = vmatpush1.msra.mxu0 0.0
    %718 = vmatprep.subr.mxu0 0.0
    %719 = vmatpush1.msra.mxu0 0.0
    %720 = vmatprep.subr.mxu0 0.0
    %721 = vmatpush1.msra.mxu0 0.0
    %722 = vmatprep.mubr.f32.mxu0 0.0
    %723 = vmatmul.mubr.f32.gmra.mrb[0].mxu0 %v653
    %v724 = vpop.f32.mrb[0].mxu0
    %v725 = vadd.f32 %v651, %v724
    %v726 = vpop.f32.mrb[0].mxu0
    %727 = vmatprep.mubr.f32.mxu0 0.0
    %728 = vmatmul.mubr.f32.gmra.mrb[0].mxu0 %v656
    %v729 = vpop.f32.mrb[0].mxu0
    %v730 = vadd.f32 %v651, %v729
    %v731 = vpop.f32.mrb[0].mxu0
    %732 = vdwg.mxu0
    %v733 = vsub.f32 0.0, %v725
    %v734 = vsub.f32 0.0, %v730
    %v735 = vmul.f32 %v733, 1.442695
    %v736 = vpow.pop %v735
    %v737 = vmul.f32 %v734, 1.442695
    %v738 = vpow.pop %v737
    %v739 = vadd.f32 %v736, 1.0
    %v740 = vadd.f32 %v738, 1.0
    %v741 = vrcp.pop %v739
    %v742 = vmul.f32 1.0, %v741
    %v743 = vrcp.pop %v740
    %v744 = vmul.f32 1.0, %v743
    %745 = vset.pattern.permute.xlu0 4
    %746 = vperm.xlu0 %745, %v19
    %v747 = vpop.permute.xlu0 %746
    %748 = vset.pattern.permute.xlu0 4
    %749 = vperm.xlu0 %748, %v20
    %v750 = vpop.permute.xlu0 %749
    %vm751 = vcmp.eq.s32.totalorder %v306, %v747
    %vm752 = vcmp.eq.s32.totalorder %v306, %v750
    %v753 = vsel %vm751, 1, 0
    %v754 = vsel %vm752, 1, 0
    %v755 = vcvt.s32.f32 %v753
    %v756 = vcvt.s32.f32 %v754
    %vm757 = vcmp.ne.s32.totalorder %v19, 4294967295
    %vm758 = vcmp.ne.s32.totalorder %v20, 4294967295
    %v759 = vsel %vm757, 1, 0
    %v760 = vsel %vm758, 1, 0
    %v761 = vcvt.s32.f32 %v759
    %v762 = vcvt.s32.f32 %v760
    %v763 = vmax.f32 %v742, 1e-07
    %v764 = vmax.f32 %v744, 1e-07
    %v765 = vmin.f32 %v763, 0.9999999
    %v766 = vmin.f32 %v764, 0.9999999
    %v767 = vlog2.pop %v765
    %v768 = vmul.f32 %v767, 0.6931472
    %v769 = vlog2.pop %v766
    %v770 = vmul.f32 %v769, 0.6931472
    %v771 = vmul.f32 %v755, %v768
    %v772 = vmul.f32 %v756, %v770
    %v773 = vsub.f32 1.0, %v755
    %v774 = vsub.f32 1.0, %v756
    %v775 = vsub.f32 1.0, %v765
    %v776 = vsub.f32 1.0, %v766
    %v777 = vlog2.pop %v775
    %v778 = vmul.f32 %v777, 0.6931472
    %v779 = vlog2.pop %v776
    %v780 = vmul.f32 %v779, 0.6931472
    %v781 = vmul.f32 %v773, %v778
    %v782 = vmul.f32 %v774, %v780
    %v783 = vadd.f32 %v771, %v781
    %v784 = vadd.f32 %v772, %v782
    %v785 = vsub.f32 0.0, %v783
    %v786 = vsub.f32 0.0, %v784
    %788 = vset.pattern.permute.xlu0 0
    %789 = vperm.xlu0 %788, %v761
    %v790 = vpop.permute.xlu0 %789
    %793 = vset.pattern.permute.xlu0 0
    %794 = vperm.xlu0 %793, %v762
    %v795 = vpop.permute.xlu0 %794
    %v797 = vmul.f32 %v785, %v790
    %v798 = vmul.f32 %v786, %v795
    %vm799 = vcmask 31744
    %v800 = vsel %vm799, %v797, 0.0
    %801 = vadd.xlane.f32.xlu0 %v800
    %v802 = vpop.xlane.xlu0 %801
    %v803 = vsel %vm799, %v798, 0.0
    %804 = vadd.xlane.f32.xlu0 %v803
    %v805 = vpop.xlane.xlu0 %804
    %v806 = vadd.f32 %v802, %v805
    %v807 = vrot.slane %v806, 4
    %v808 = vadd.f32 %v806, %v807
    %v809 = vrot.slane %v808, 2
    %v810 = vadd.f32 %v808, %v809
    %v811 = vrot.slane %v810, 1
    %v812 = vadd.f32 %v810, %v811
    %815 = vrot.lane.b32.xlu0 %v742, 4
    %v816 = vpop.permute.xlu0 %815
    %817 = vrot.lane.b32.xlu0 %v744, 4
    %v818 = vpop.permute.xlu0 %817
    %v821 = vsel %vm799, %v725, %v816
    %v822 = vsel %vm799, %v730, %v818
    %vm823 = vcmask 64512
    %v824 = vsel %vm823, %v821, %v812
    %v825 = vsel %vm823, %v822, %v812
    %vm826 = vcmask 72704
    %v827 = vsel %vm826, %v824, 0.0
    %v828 = vsel %vm826, %v825, 0.0
    %829 = vst [vmem:[#allocation2] sm:$0xff] %v827
    %830 = vst [vmem:[#allocation2 + $0x8] sm:$0xff] %v828
    // Predicated region
    $region14: #{tpu_custom_call.1} parent=1 // pred_check
      _
    $region15: #{tpu_custom_call.1} parent=1 // pred_check_branch
      %832 = sbr.rel (0) target = $region17
    $region16: #{tpu_custom_call.1} parent=1 // pred_region
      %s834 = ssub.s32 256, 256
      %835 = vsyncadd [#allocation3], %s834
      %s836 = sshll.u32 [#allocation2], 4
      %s837 = int_to_ptr.vmem [resolvable:$true] %s836
      %842 = dma.vmem_to_hbm [thread:$0]  %s837, 256, %s3, [#allocation3], 128, 128, 8
    $region17: #{tpu_custom_call.1} parent=1 // pred_fallthru
      _
    // Predicated region
    $region18: #{tpu_custom_call.1} parent=1 // pred_check
      _
    $region19: #{tpu_custom_call.1} parent=1 // pred_check_branch
      %844 = sbr.rel (0) target = $region21
    $region20: #{tpu_custom_call.1} parent=1 // pred_region
      %845 = dma.done [#allocation3], 256
    $region21: #{tpu_custom_call.1} parent=1 // pred_fallthru
      _
    %846 = vsyncpa [#allocation3], 1

</llo_original>
